<compile_context>
chip_gen: v6e
topology: v6e:2x2x1
jax: 0.10.0
libtpu: 0.0.40
codegen_flags: <defaults>
</compile_context>

<pallas_src>
import functools

import numpy as np

import jax
import jax.numpy as jnp
from jax.experimental import pallas as pl
from jax.experimental.pallas import tpu as pltpu


_LANE = 128                       # last block dim must be a multiple of this
_MAX_LANE_TILE = 8192             # large tiles amortize the fixed per-grid-step cost
_ROLL_VMEM_BUDGET = 8 * 1024 * 1024  # conservative resident-block budget (v7x: 64 MiB phys)


def _softplus(x):
    # Numerically stable softplus == torch.nn.functional.softplus (to f32 precision).
    return jnp.maximum(x, 0.0) + jnp.log1p(jnp.exp(-jnp.abs(x)))


def _contract(w, x):
    """(Cout, Cin) x (Cin, S) -> (Cout, S) via unrolled broadcast FMAs.

    Cin/Cout are tiny (species / cartesian vectors); an MXU matmul would be <1%
    utilised after (8,128) padding, so lane-dense VPU FMAs are cheaper.
    """
    cout, cin = w.shape
    acc = w[:, 0:1] * x[0:1, :]
    for c in range(1, cin):
        acc = acc + w[:, c:c + 1] * x[c:c + 1, :]
    return acc


def _fold_channels(weights, bias, cin):
    # The reference sums channels BEFORE the softplus, so summing the per-channel
    # weights/bias up front is exact.
    w_sum = jnp.sum(weights.astype(jnp.float32), axis=0)          # (Cout, 2*Cin)
    b_sum = jnp.sum(bias.astype(jnp.float32), axis=0)[:, None]    # (Cout, 1)
    return w_sum[:, :cin], w_sum[:, cin:], b_sum


def _detect_uniform_shifts(nn_rows):
    """Return per-neighbour shifts k_z with NN[z, s] == (s + k_z) % Ns, else None."""
    try:
        tbl = np.asarray(jax.device_get(nn_rows))
    except Exception:
        return None                     # traced table -> general fallback path
    if tbl.ndim != 2:
        return None
    z_count, ns = tbl.shape
    ar = np.arange(ns)
    shifts = []
    for z in range(z_count):
        d = (tbl[z].astype(np.int64) - ar) % ns
        if not np.all(d == d[0]):
            return None
        shifts.append(int(d[0]))
    return tuple(shifts)


# ----------------------------------------------------------------------------------
# Fast path: uniform lattice shifts -> in-kernel neighbour views via pltpu.roll
# ----------------------------------------------------------------------------------

def _roll_layer_kernel(x_ref, w_self_ref, w_ngb_ref, b_ref, o_ref, *, shifts, ns):
    # x_ref: (Cin, Ns) full site axis resident in VMEM.
    x = x_ref[...].astype(jnp.float32)
    base = _contract(w_self_ref[...], x) + b_ref[...]          # z-invariant term, hoisted
    acc = jnp.zeros_like(base)                                  # vreg-resident f32 accumulator
    for k in shifts:                                            # static unroll over Z
        r = (ns - (k % ns)) % ns
        g = x if r == 0 else pltpu.roll(x, r, axis=1)           # g[:, s] = x[:, (s + k) % Ns]
        acc = acc + _softplus(base + _contract(w_ngb_ref[...], g))
    o_ref[...] = acc.astype(o_ref.dtype)


def _roll_final_kernel(x_ref, w_self_ref, w_ngb_ref, b_ref, j_ref, o_ref, *, shifts, ns):
    # Final msgPassLayer fused with the jump-vector projection (reshapeOut + matmul):
    # the layer output h never round-trips through HBM before the neighbour gather.
    x = x_ref[...].astype(jnp.float32)
    base = _contract(w_self_ref[...], x) + b_ref[...]
    h = jnp.zeros_like(base)                                    # (Cout, Ns)
    for k in shifts:
        r = (ns - (k % ns)) % ns
        g = x if r == 0 else pltpu.roll(x, r, axis=1)
        h = h + _softplus(base + _contract(w_ngb_ref[...], g))
    j = j_ref[...]                                              # (3, Z)
    ndim = j.shape[0]
    cout = h.shape[0]
    acc = jnp.zeros((cout, ndim, ns), jnp.float32)
    for zi, k in enumerate(shifts):
        r = (ns - (k % ns)) % ns
        hz = h if r == 0 else pltpu.roll(h, r, axis=1)          # h[:, NN[z]]
        acc = acc + j[None, :, zi:zi + 1] * hz[:, None, :]      # (Cout, 3, Ns)
    o_ref[...] = acc.astype(o_ref.dtype)


def _msg_pass_layer_roll(x, weights, bias, shifts):
    nb, cin, ns = x.shape
    cout = weights.shape[1]
    w_self, w_ngb, b_sum = _fold_channels(weights, bias, cin)
    kernel = functools.partial(_roll_layer_kernel, shifts=shifts, ns=ns)
    return pl.pallas_call(
        kernel,
        out_shape=jax.ShapeDtypeStruct((nb, cout, ns), jnp.float32),
        grid_spec=pltpu.PrefetchScalarGridSpec(
            num_scalar_prefetch=0,
            grid=(nb,),
            in_specs=[
                pl.BlockSpec((None, cin, ns), lambda b: (b, 0, 0)),
                pl.BlockSpec((cout, cin), lambda b: (0, 0)),
                pl.BlockSpec((cout, cin), lambda b: (0, 0)),
                pl.BlockSpec((cout, 1), lambda b: (0, 0)),
            ],
            out_specs=pl.BlockSpec((None, cout, ns), lambda b: (b, 0, 0)),
        ),
        compiler_params=pltpu.CompilerParams(dimension_semantics=("parallel",)),
    )(x.astype(jnp.float32), w_self, w_ngb, b_sum)


def _msg_pass_final_roll(x, weights, bias, shifts, jump_vecs):
    nb, cin, ns = x.shape
    cout = weights.shape[1]
    ndim, z_count = jump_vecs.shape
    w_self, w_ngb, b_sum = _fold_channels(weights, bias, cin)
    kernel = functools.partial(_roll_final_kernel, shifts=shifts, ns=ns)
    return pl.pallas_call(
        kernel,
        out_shape=jax.ShapeDtypeStruct((nb, cout, ndim, ns), jnp.float32),
        grid_spec=pltpu.PrefetchScalarGridSpec(
            num_scalar_prefetch=0,
            grid=(nb,),
            in_specs=[
                pl.BlockSpec((None, cin, ns), lambda b: (b, 0, 0)),
                pl.BlockSpec((cout, cin), lambda b: (0, 0)),
                pl.BlockSpec((cout, cin), lambda b: (0, 0)),
                pl.BlockSpec((cout, 1), lambda b: (0, 0)),
                pl.BlockSpec((ndim, z_count), lambda b: (0, 0)),
            ],
            out_specs=pl.BlockSpec((None, cout, ndim, ns), lambda b: (b, 0, 0, 0)),
        ),
        compiler_params=pltpu.CompilerParams(dimension_semantics=("parallel",)),
    )(x.astype(jnp.float32), w_self, w_ngb, b_sum, jump_vecs.astype(jnp.float32))


# ----------------------------------------------------------------------------------
# General fallback path: arbitrary NN tables (XLA gather, Z folded into the block)
# ----------------------------------------------------------------------------------

def _lane_tiling(ns):
    ts = min(_MAX_LANE_TILE, pl.cdiv(ns, _LANE) * _LANE)
    ns_pad = pl.cdiv(ns, ts) * ts
    return ts, ns_pad


def _general_layer_kernel(x_ref, g_ref, w_self_ref, w_ngb_ref, b_ref, o_ref, *, z_count):
    # x_ref: (Cin, TS); g_ref: (Cin, Z, TS) - full Z folded into one block.
    x = x_ref[...].astype(jnp.float32)
    base = _contract(w_self_ref[...], x) + b_ref[...]           # hoisted z-invariant term
    acc = jnp.zeros_like(base)                                  # vreg accumulator
    for z in range(z_count):                                    # static unroll
        g = g_ref[:, z, :].astype(jnp.float32)
        acc = acc + _softplus(base + _contract(w_ngb_ref[...], g))
    o_ref[...] = acc.astype(o_ref.dtype)


def _msg_pass_layer_general(x, weights, bias, nn_rows):
    nb, cin, ns = x.shape
    cout = weights.shape[1]
    z_count = nn_rows.shape[0]
    w_self, w_ngb, b_sum = _fold_channels(weights, bias, cin)

    ts, ns_pad = _lane_tiling(ns)
    n_tiles = ns_pad // ts
    xp = x.astype(jnp.float32)
    if ns_pad != ns:
        # Pad the small x / int index table, never the Zx-sized gathered array.
        xp = jnp.pad(xp, ((0, 0), (0, 0), (0, ns_pad - ns)))
        nn_rows = jnp.pad(nn_rows, ((0, 0), (0, ns_pad - ns)))

    # TODO(synk): an arbitrary per-site neighbour gather has no per-lane gather
    # primitive in Pallas TPU, so for non-uniform NN tables it stays as a single XLA
    # take here (read exactly once by the kernel; no transpose, no Zx-sized padding).
    g = jnp.take(xp, nn_rows, axis=2)                 # (Nb, Cin, Z, Ns_pad)

    kernel = functools.partial(_general_layer_kernel, z_count=z_count)
    out = pl.pallas_call(
        kernel,
        out_shape=jax.ShapeDtypeStruct((nb, cout, ns_pad), jnp.float32),
        grid_spec=pltpu.PrefetchScalarGridSpec(
            num_scalar_prefetch=0,
            grid=(nb, n_tiles),
            in_specs=[
                pl.BlockSpec((None, cin, ts), lambda b, t: (b, 0, t)),
                pl.BlockSpec((None, cin, z_count, ts), lambda b, t: (b, 0, 0, t)),
                pl.BlockSpec((cout, cin), lambda b, t: (0, 0)),
                pl.BlockSpec((cout, cin), lambda b, t: (0, 0)),
                pl.BlockSpec((cout, 1), lambda b, t: (0, 0)),
            ],
            out_specs=pl.BlockSpec((None, cout, ts), lambda b, t: (b, 0, t)),
        ),
        compiler_params=pltpu.CompilerParams(
            dimension_semantics=("parallel", "parallel")),
    )(xp, g, w_self, w_ngb, b_sum)
    return out[:, :, :ns]


def _jump_kernel(g_ref, j_ref, o_ref):
    # g_ref: (Z, TS) neighbour-gathered coefficients, j_ref: (3, Z) jump vectors.
    o_ref[...] = _contract(j_ref[...], g_ref[...].astype(jnp.float32)).astype(o_ref.dtype)


def _jump_projection_general(coeffs, nn_rows, jump_vecs):
    nb, nch, ns = coeffs.shape
    z_count = nn_rows.shape[0]
    ndim = jump_vecs.shape[0]

    ts, ns_pad = _lane_tiling(ns)
    n_tiles = ns_pad // ts
    h = coeffs.astype(jnp.float32)
    if ns_pad != ns:
        h = jnp.pad(h, ((0, 0), (0, 0), (0, ns_pad - ns)))
        nn_rows = jnp.pad(nn_rows, ((0, 0), (0, ns_pad - ns)))

    # TODO(synk): per-site gather kept in XLA for arbitrary tables (see above).
    g = jnp.take(h, nn_rows, axis=2).reshape(nb * nch, z_count, ns_pad)

    out = pl.pallas_call(
        _jump_kernel,
        out_shape=jax.ShapeDtypeStruct((nb * nch, ndim, ns_pad), jnp.float32),
        grid_spec=pltpu.PrefetchScalarGridSpec(
            num_scalar_prefetch=0,
            grid=(nb * nch, n_tiles),
            in_specs=[
                pl.BlockSpec((None, z_count, ts), lambda r, t: (r, 0, t)),
                pl.BlockSpec((ndim, z_count), lambda r, t: (0, 0)),
            ],
            out_specs=pl.BlockSpec((None, ndim, ts), lambda r, t: (r, 0, t)),
        ),
        compiler_params=pltpu.CompilerParams(
            dimension_semantics=("parallel", "parallel")),
    )(g, jump_vecs.astype(jnp.float32))
    return out.reshape(nb, nch, ndim, ns_pad)[..., :ns]


# ----------------------------------------------------------------------------------
# Network forward
# ----------------------------------------------------------------------------------

def msg_pass_net_forward(x, layer_weights, layer_biases, nn_sites, jump_vecs,
                         use_roll=None):
    """Pallas forward of msgPassNet.

    x             : (Nb, NSpec, Nsites)
    layer_weights : list of (NChannels, Cout_l, 2*Cin_l)
    layer_biases  : list of (NChannels, Cout_l)
    nn_sites      : (Z+1, Nsites) int32 (row 0 = the site itself, rows 1.. = neighbours)
    jump_vecs     : (3, Z) nearest-neighbour jump vectors
    use_roll      : None -> auto-detect lattice shifts; True -> require; False -> general path
    returns       : (Nb, VecsPerSite, 3, Nsites)
    """
    nn_rows = nn_sites[1:]
    nb, cin0, ns = x.shape

    shifts = _detect_uniform_shifts(nn_rows) if use_roll in (None, True) else None
    max_c = max(max(int(w.shape[1]) for w in layer_weights), cin0)
    roll_ok = (
        shifts is not None
        and ns % _LANE == 0                                   # circular roll needs no lane padding
        and 4 * max_c * ns * 4 < _ROLL_VMEM_BUDGET            # resident x/out blocks (dbl-buffered)
    )
    if use_roll and not roll_ok:
        raise ValueError("roll fast path requested but the NN table / sizes do not allow it")

    if roll_ok:
        h = x.astype(jnp.float32)
        for w, b in zip(layer_weights[:-1], layer_biases[:-1]):
            h = _msg_pass_layer_roll(h, w, b, shifts)
        return _msg_pass_final_roll(h, layer_weights[-1], layer_biases[-1], shifts, jump_vecs)

    h = x
    for w, b in zip(layer_weights, layer_biases):
        h = _msg_pass_layer_general(h, w, b, nn_rows)
    return _jump_projection_general(h, nn_rows, jump_vecs)


def msg_pass_net_reference(x, layer_weights, layer_biases, nn_sites, jump_vecs):
    """Pure-JAX transcription of the PyTorch forward (per-channel, torch op order)."""
    nn_rows = nn_sites[1:]
    h = x
    for w, b in zip(layer_weights, layer_biases):
        nb, cin, ns = h.shape
        out = jnp.zeros((nb, w.shape[1], ns), h.dtype)
        for z in range(nn_rows.shape[0]):
            total = jnp.concatenate([h, h[:, :, nn_rows[z]]], axis=1)   # (Nb, 2Cin, Ns)
            o = jnp.tensordot(total, w, axes=([1], [2]))                # (Nb, Ns, Nch, Cout)
            o = o + b[None, None, :, :]
            o = jnp.sum(jnp.swapaxes(o, 1, 3), axis=2)                  # (Nb, Cout, Ns)
            out = out + jax.nn.softplus(o)
        h = out
    g = h[:, :, nn_rows]                                                # (Nb, Cout, Z, Ns)
    return jnp.einsum('dz,bczs->bcds', jump_vecs, g)


if __name__ == "__main__":
    key = jax.random.PRNGKey(0)

    # Small shapes consistent with the module: 128-site lattice, coordination 8,
    # 4 species, 4 channels, 2 hidden message-passing layers + final layer, 1 vec/site.
    n_batch, n_spec, n_sites = 2, 4, 128
    z_coord = 8
    n_channels = 4
    n_layers = 2
    vecs_per_site = 1
    mean, std = 0.5, 0.1

    keys = jax.random.split(key, 8)

    x = jax.random.normal(keys[0], (n_batch, n_spec, n_sites), dtype=jnp.float32)

    # Periodic neighbour table: row 0 = the site itself, rows 1..Z = neighbours.
    site_ids = jnp.arange(n_sites, dtype=jnp.int32)
    shifts = jnp.array([1, -1, 2, -2, 3, -3, 5, -5], dtype=jnp.int32)
    nn_sites = jnp.concatenate(
        [site_ids[None, :], (site_ids[None, :] + shifts[:, None]) % n_sites], axis=0
    ).astype(jnp.int32)

    jump_vecs = jax.random.normal(keys[1], (3, z_coord), dtype=jnp.float32)

    layer_dims = [(n_spec, n_spec)] * n_layers + [(n_spec, vecs_per_site)]
    layer_weights, layer_biases = [], []
    for i, (cin, cout) in enumerate(layer_dims):
        wkey, bkey = jax.random.split(keys[2 + i])
        layer_weights.append(
            mean + std * jax.random.normal(wkey, (n_channels, cout, 2 * cin), dtype=jnp.float32))
        layer_biases.append(
            mean + std * jax.random.normal(bkey, (n_channels, cout), dtype=jnp.float32))

    # The demo lattice is a set of uniform circular shifts -> the roll fast path applies.
    assert _detect_uniform_shifts(nn_sites[1:]) is not None

    ref = msg_pass_net_reference(x, layer_weights, layer_biases, nn_sites, jump_vecs)
    scale = float(jnp.max(jnp.abs(ref))) + 1e-6

    # 1) Fast path: in-kernel roll gather, fused final layer + jump projection.
    out_roll = jax.block_until_ready(
        msg_pass_net_forward(x, layer_weights, layer_biases, nn_sites, jump_vecs))
    assert out_roll.shape == ref.shape == (n_batch, vecs_per_site, 3, n_sites)
    err = float(jnp.max(jnp.abs(out_roll - ref)))
    assert err / scale < 1e-4, f"roll path normalized max error too large: {err / scale}"

    # 2) General fallback path (arbitrary NN table): XLA gather, Z folded into the block.
    out_gen = jax.block_until_ready(
        msg_pass_net_forward(x, layer_weights, layer_biases, nn_sites, jump_vecs,
                             use_roll=False))
    assert out_gen.shape == ref.shape
    err = float(jnp.max(jnp.abs(out_gen - ref)))
    assert err / scale < 1e-4, f"general path normalized max error too large: {err / scale}"

    print("KERNEL_OK")
</pallas_src>

<mosaic_0001>
module attributes {stable_mosaic.version = 11 : i64} {
  func.func @_roll_layer_kernel(%arg0: i32, %arg1: memref<1x4x128xf32, #tpu.memory_space<vmem>>, %arg2: memref<4x4xf32, #tpu.memory_space<vmem>>, %arg3: memref<4x4xf32, #tpu.memory_space<vmem>>, %arg4: memref<4x1xf32, #tpu.memory_space<vmem>>, %arg5: memref<1x4x128xf32, #tpu.memory_space<vmem>>) attributes {dimension_semantics = [#tpu.dimension_semantics<parallel>], iteration_bounds = array<i64: 2>, scalar_prefetch = 0 : i64, scratch_operands = 0 : i64, tpu.core_type = #tpu.core_type<tc>, window_params = [{transform_indices = @transform_0, window_bounds = array<i64: 1, 4, 128>}, {pipeline_mode = #tpu.pipeline_mode<synchronous>, transform_indices = @transform_1, window_bounds = array<i64: 4, 4>}, {pipeline_mode = #tpu.pipeline_mode<synchronous>, transform_indices = @transform_2, window_bounds = array<i64: 4, 4>}, {pipeline_mode = #tpu.pipeline_mode<synchronous>, transform_indices = @transform_3, window_bounds = array<i64: 4, 1>}, {transform_indices = @transform_4, window_bounds = array<i64: 1, 4, 128>}]} {
    %c0 = arith.constant 0 : index
    %c0_0 = arith.constant 0 : index
    %c0_1 = arith.constant 0 : index
    %0 = vector.load %arg1[%c0, %c0_0, %c0_1] : memref<1x4x128xf32, #tpu.memory_space<vmem>>, vector<1x4x128xf32>
    %1 = vector.shape_cast %0 : vector<1x4x128xf32> to vector<4x128xf32>
    %c0_2 = arith.constant 0 : index
    %c0_3 = arith.constant 0 : index
    %2 = vector.load %arg2[%c0_2, %c0_3] : memref<4x4xf32, #tpu.memory_space<vmem>>, vector<4x4xf32>
    %3 = vector.extract_strided_slice %2 {offsets = [0, 0], sizes = [4, 1], strides = [1, 1]} : vector<4x4xf32> to vector<4x1xf32>
    %4 = vector.extract_strided_slice %1 {offsets = [0, 0], sizes = [1, 128], strides = [1, 1]} : vector<4x128xf32> to vector<1x128xf32>
    %5 = vector.broadcast %3 : vector<4x1xf32> to vector<4x128xf32>
    %6 = vector.broadcast %4 : vector<1x128xf32> to vector<4x128xf32>
    %7 = arith.mulf %5, %6 : vector<4x128xf32>
    %8 = vector.extract_strided_slice %2 {offsets = [0, 1], sizes = [4, 1], strides = [1, 1]} : vector<4x4xf32> to vector<4x1xf32>
    %9 = vector.extract_strided_slice %1 {offsets = [1, 0], sizes = [1, 128], strides = [1, 1]} : vector<4x128xf32> to vector<1x128xf32>
    %10 = vector.broadcast %8 : vector<4x1xf32> to vector<4x128xf32>
    %11 = vector.broadcast %9 : vector<1x128xf32> to vector<4x128xf32>
    %12 = arith.mulf %10, %11 : vector<4x128xf32>
    %13 = arith.addf %7, %12 : vector<4x128xf32>
    %14 = vector.extract_strided_slice %2 {offsets = [0, 2], sizes = [4, 1], strides = [1, 1]} : vector<4x4xf32> to vector<4x1xf32>
    %15 = vector.extract_strided_slice %1 {offsets = [2, 0], sizes = [1, 128], strides = [1, 1]} : vector<4x128xf32> to vector<1x128xf32>
    %16 = vector.broadcast %14 : vector<4x1xf32> to vector<4x128xf32>
    %17 = vector.broadcast %15 : vector<1x128xf32> to vector<4x128xf32>
    %18 = arith.mulf %16, %17 : vector<4x128xf32>
    %19 = arith.addf %13, %18 : vector<4x128xf32>
    %20 = vector.extract_strided_slice %2 {offsets = [0, 3], sizes = [4, 1], strides = [1, 1]} : vector<4x4xf32> to vector<4x1xf32>
    %21 = vector.extract_strided_slice %1 {offsets = [3, 0], sizes = [1, 128], strides = [1, 1]} : vector<4x128xf32> to vector<1x128xf32>
    %22 = vector.broadcast %20 : vector<4x1xf32> to vector<4x128xf32>
    %23 = vector.broadcast %21 : vector<1x128xf32> to vector<4x128xf32>
    %24 = arith.mulf %22, %23 : vector<4x128xf32>
    %25 = arith.addf %19, %24 : vector<4x128xf32>
    %c0_4 = arith.constant 0 : index
    %c0_5 = arith.constant 0 : index
    %26 = vector.load %arg4[%c0_4, %c0_5] : memref<4x1xf32, #tpu.memory_space<vmem>>, vector<4x1xf32>
    %27 = vector.broadcast %26 : vector<4x1xf32> to vector<4x128xf32>
    %28 = arith.addf %25, %27 : vector<4x128xf32>
    %cst = arith.constant 0.000000e+00 : f32
    %29 = vector.broadcast %cst : f32 to vector<4x128xf32>
    %c127_i32 = arith.constant 127 : i32
    %30 = tpu.dynamic_rotate %1 by %c127_i32 dim 1 : vector<4x128xf32>, i32 -> vector<4x128xf32>
    %c0_6 = arith.constant 0 : index
    %c0_7 = arith.constant 0 : index
    %31 = vector.load %arg3[%c0_6, %c0_7] : memref<4x4xf32, #tpu.memory_space<vmem>>, vector<4x4xf32>
    %32 = vector.extract_strided_slice %31 {offsets = [0, 0], sizes = [4, 1], strides = [1, 1]} : vector<4x4xf32> to vector<4x1xf32>
    %33 = vector.extract_strided_slice %30 {offsets = [0, 0], sizes = [1, 128], strides = [1, 1]} : vector<4x128xf32> to vector<1x128xf32>
    %34 = vector.broadcast %32 : vector<4x1xf32> to vector<4x128xf32>
    %35 = vector.broadcast %33 : vector<1x128xf32> to vector<4x128xf32>
    %36 = arith.mulf %34, %35 : vector<4x128xf32>
    %37 = vector.extract_strided_slice %31 {offsets = [0, 1], sizes = [4, 1], strides = [1, 1]} : vector<4x4xf32> to vector<4x1xf32>
    %38 = vector.extract_strided_slice %30 {offsets = [1, 0], sizes = [1, 128], strides = [1, 1]} : vector<4x128xf32> to vector<1x128xf32>
    %39 = vector.broadcast %37 : vector<4x1xf32> to vector<4x128xf32>
    %40 = vector.broadcast %38 : vector<1x128xf32> to vector<4x128xf32>
    %41 = arith.mulf %39, %40 : vector<4x128xf32>
    %42 = arith.addf %36, %41 : vector<4x128xf32>
    %43 = vector.extract_strided_slice %31 {offsets = [0, 2], sizes = [4, 1], strides = [1, 1]} : vector<4x4xf32> to vector<4x1xf32>
    %44 = vector.extract_strided_slice %30 {offsets = [2, 0], sizes = [1, 128], strides = [1, 1]} : vector<4x128xf32> to vector<1x128xf32>
    %45 = vector.broadcast %43 : vector<4x1xf32> to vector<4x128xf32>
    %46 = vector.broadcast %44 : vector<1x128xf32> to vector<4x128xf32>
    %47 = arith.mulf %45, %46 : vector<4x128xf32>
    %48 = arith.addf %42, %47 : vector<4x128xf32>
    %49 = vector.extract_strided_slice %31 {offsets = [0, 3], sizes = [4, 1], strides = [1, 1]} : vector<4x4xf32> to vector<4x1xf32>
    %50 = vector.extract_strided_slice %30 {offsets = [3, 0], sizes = [1, 128], strides = [1, 1]} : vector<4x128xf32> to vector<1x128xf32>
    %51 = vector.broadcast %49 : vector<4x1xf32> to vector<4x128xf32>
    %52 = vector.broadcast %50 : vector<1x128xf32> to vector<4x128xf32>
    %53 = arith.mulf %51, %52 : vector<4x128xf32>
    %54 = arith.addf %48, %53 : vector<4x128xf32>
    %55 = arith.addf %28, %54 : vector<4x128xf32>
    %cst_8 = arith.constant 0.000000e+00 : f32
    %56 = vector.broadcast %cst_8 : f32 to vector<4x128xf32>
    %57 = arith.maximumf %55, %56 : vector<4x128xf32>
    %58 = math.absf %55 : vector<4x128xf32>
    %cst_9 = arith.constant 0.000000e+00 : f32
    %59 = vector.broadcast %cst_9 : f32 to vector<4x128xf32>
    %60 = arith.subf %59, %58 : vector<4x128xf32>
    %61 = math.exp %60 : vector<4x128xf32>
    %62 = math.log1p %61 : vector<4x128xf32>
    %63 = arith.addf %57, %62 : vector<4x128xf32>
    %64 = arith.addf %29, %63 : vector<4x128xf32>
    %c1_i32 = arith.constant 1 : i32
    %65 = tpu.dynamic_rotate %1 by %c1_i32 dim 1 : vector<4x128xf32>, i32 -> vector<4x128xf32>
    %c0_10 = arith.constant 0 : index
    %c0_11 = arith.constant 0 : index
    %66 = vector.load %arg3[%c0_10, %c0_11] : memref<4x4xf32, #tpu.memory_space<vmem>>, vector<4x4xf32>
    %67 = vector.extract_strided_slice %66 {offsets = [0, 0], sizes = [4, 1], strides = [1, 1]} : vector<4x4xf32> to vector<4x1xf32>
    %68 = vector.extract_strided_slice %65 {offsets = [0, 0], sizes = [1, 128], strides = [1, 1]} : vector<4x128xf32> to vector<1x128xf32>
    %69 = vector.broadcast %67 : vector<4x1xf32> to vector<4x128xf32>
    %70 = vector.broadcast %68 : vector<1x128xf32> to vector<4x128xf32>
    %71 = arith.mulf %69, %70 : vector<4x128xf32>
    %72 = vector.extract_strided_slice %66 {offsets = [0, 1], sizes = [4, 1], strides = [1, 1]} : vector<4x4xf32> to vector<4x1xf32>
    %73 = vector.extract_strided_slice %65 {offsets = [1, 0], sizes = [1, 128], strides = [1, 1]} : vector<4x128xf32> to vector<1x128xf32>
    %74 = vector.broadcast %72 : vector<4x1xf32> to vector<4x128xf32>
    %75 = vector.broadcast %73 : vector<1x128xf32> to vector<4x128xf32>
    %76 = arith.mulf %74, %75 : vector<4x128xf32>
    %77 = arith.addf %71, %76 : vector<4x128xf32>
    %78 = vector.extract_strided_slice %66 {offsets = [0, 2], sizes = [4, 1], strides = [1, 1]} : vector<4x4xf32> to vector<4x1xf32>
    %79 = vector.extract_strided_slice %65 {offsets = [2, 0], sizes = [1, 128], strides = [1, 1]} : vector<4x128xf32> to vector<1x128xf32>
    %80 = vector.broadcast %78 : vector<4x1xf32> to vector<4x128xf32>
    %81 = vector.broadcast %79 : vector<1x128xf32> to vector<4x128xf32>
    %82 = arith.mulf %80, %81 : vector<4x128xf32>
    %83 = arith.addf %77, %82 : vector<4x128xf32>
    %84 = vector.extract_strided_slice %66 {offsets = [0, 3], sizes = [4, 1], strides = [1, 1]} : vector<4x4xf32> to vector<4x1xf32>
    %85 = vector.extract_strided_slice %65 {offsets = [3, 0], sizes = [1, 128], strides = [1, 1]} : vector<4x128xf32> to vector<1x128xf32>
    %86 = vector.broadcast %84 : vector<4x1xf32> to vector<4x128xf32>
    %87 = vector.broadcast %85 : vector<1x128xf32> to vector<4x128xf32>
    %88 = arith.mulf %86, %87 : vector<4x128xf32>
    %89 = arith.addf %83, %88 : vector<4x128xf32>
    %90 = arith.addf %28, %89 : vector<4x128xf32>
    %cst_12 = arith.constant 0.000000e+00 : f32
    %91 = vector.broadcast %cst_12 : f32 to vector<4x128xf32>
    %92 = arith.maximumf %90, %91 : vector<4x128xf32>
    %93 = math.absf %90 : vector<4x128xf32>
    %cst_13 = arith.constant 0.000000e+00 : f32
    %94 = vector.broadcast %cst_13 : f32 to vector<4x128xf32>
    %95 = arith.subf %94, %93 : vector<4x128xf32>
    %96 = math.exp %95 : vector<4x128xf32>
    %97 = math.log1p %96 : vector<4x128xf32>
    %98 = arith.addf %92, %97 : vector<4x128xf32>
    %99 = arith.addf %64, %98 : vector<4x128xf32>
    %c126_i32 = arith.constant 126 : i32
    %100 = tpu.dynamic_rotate %1 by %c126_i32 dim 1 : vector<4x128xf32>, i32 -> vector<4x128xf32>
    %c0_14 = arith.constant 0 : index
    %c0_15 = arith.constant 0 : index
    %101 = vector.load %arg3[%c0_14, %c0_15] : memref<4x4xf32, #tpu.memory_space<vmem>>, vector<4x4xf32>
    %102 = vector.extract_strided_slice %101 {offsets = [0, 0], sizes = [4, 1], strides = [1, 1]} : vector<4x4xf32> to vector<4x1xf32>
    %103 = vector.extract_strided_slice %100 {offsets = [0, 0], sizes = [1, 128], strides = [1, 1]} : vector<4x128xf32> to vector<1x128xf32>
    %104 = vector.broadcast %102 : vector<4x1xf32> to vector<4x128xf32>
    %105 = vector.broadcast %103 : vector<1x128xf32> to vector<4x128xf32>
    %106 = arith.mulf %104, %105 : vector<4x128xf32>
    %107 = vector.extract_strided_slice %101 {offsets = [0, 1], sizes = [4, 1], strides = [1, 1]} : vector<4x4xf32> to vector<4x1xf32>
    %108 = vector.extract_strided_slice %100 {offsets = [1, 0], sizes = [1, 128], strides = [1, 1]} : vector<4x128xf32> to vector<1x128xf32>
    %109 = vector.broadcast %107 : vector<4x1xf32> to vector<4x128xf32>
    %110 = vector.broadcast %108 : vector<1x128xf32> to vector<4x128xf32>
    %111 = arith.mulf %109, %110 : vector<4x128xf32>
    %112 = arith.addf %106, %111 : vector<4x128xf32>
    %113 = vector.extract_strided_slice %101 {offsets = [0, 2], sizes = [4, 1], strides = [1, 1]} : vector<4x4xf32> to vector<4x1xf32>
    %114 = vector.extract_strided_slice %100 {offsets = [2, 0], sizes = [1, 128], strides = [1, 1]} : vector<4x128xf32> to vector<1x128xf32>
    %115 = vector.broadcast %113 : vector<4x1xf32> to vector<4x128xf32>
    %116 = vector.broadcast %114 : vector<1x128xf32> to vector<4x128xf32>
    %117 = arith.mulf %115, %116 : vector<4x128xf32>
    %118 = arith.addf %112, %117 : vector<4x128xf32>
    %119 = vector.extract_strided_slice %101 {offsets = [0, 3], sizes = [4, 1], strides = [1, 1]} : vector<4x4xf32> to vector<4x1xf32>
    %120 = vector.extract_strided_slice %100 {offsets = [3, 0], sizes = [1, 128], strides = [1, 1]} : vector<4x128xf32> to vector<1x128xf32>
    %121 = vector.broadcast %119 : vector<4x1xf32> to vector<4x128xf32>
    %122 = vector.broadcast %120 : vector<1x128xf32> to vector<4x128xf32>
    %123 = arith.mulf %121, %122 : vector<4x128xf32>
    %124 = arith.addf %118, %123 : vector<4x128xf32>
    %125 = arith.addf %28, %124 : vector<4x128xf32>
    %cst_16 = arith.constant 0.000000e+00 : f32
    %126 = vector.broadcast %cst_16 : f32 to vector<4x128xf32>
    %127 = arith.maximumf %125, %126 : vector<4x128xf32>
    %128 = math.absf %125 : vector<4x128xf32>
    %cst_17 = arith.constant 0.000000e+00 : f32
    %129 = vector.broadcast %cst_17 : f32 to vector<4x128xf32>
    %130 = arith.subf %129, %128 : vector<4x128xf32>
    %131 = math.exp %130 : vector<4x128xf32>
    %132 = math.log1p %131 : vector<4x128xf32>
    %133 = arith.addf %127, %132 : vector<4x128xf32>
    %134 = arith.addf %99, %133 : vector<4x128xf32>
    %c2_i32 = arith.constant 2 : i32
    %135 = tpu.dynamic_rotate %1 by %c2_i32 dim 1 : vector<4x128xf32>, i32 -> vector<4x128xf32>
    %c0_18 = arith.constant 0 : index
    %c0_19 = arith.constant 0 : index
    %136 = vector.load %arg3[%c0_18, %c0_19] : memref<4x4xf32, #tpu.memory_space<vmem>>, vector<4x4xf32>
    %137 = vector.extract_strided_slice %136 {offsets = [0, 0], sizes = [4, 1], strides = [1, 1]} : vector<4x4xf32> to vector<4x1xf32>
    %138 = vector.extract_strided_slice %135 {offsets = [0, 0], sizes = [1, 128], strides = [1, 1]} : vector<4x128xf32> to vector<1x128xf32>
    %139 = vector.broadcast %137 : vector<4x1xf32> to vector<4x128xf32>
    %140 = vector.broadcast %138 : vector<1x128xf32> to vector<4x128xf32>
    %141 = arith.mulf %139, %140 : vector<4x128xf32>
    %142 = vector.extract_strided_slice %136 {offsets = [0, 1], sizes = [4, 1], strides = [1, 1]} : vector<4x4xf32> to vector<4x1xf32>
    %143 = vector.extract_strided_slice %135 {offsets = [1, 0], sizes = [1, 128], strides = [1, 1]} : vector<4x128xf32> to vector<1x128xf32>
    %144 = vector.broadcast %142 : vector<4x1xf32> to vector<4x128xf32>
    %145 = vector.broadcast %143 : vector<1x128xf32> to vector<4x128xf32>
    %146 = arith.mulf %144, %145 : vector<4x128xf32>
    %147 = arith.addf %141, %146 : vector<4x128xf32>
    %148 = vector.extract_strided_slice %136 {offsets = [0, 2], sizes = [4, 1], strides = [1, 1]} : vector<4x4xf32> to vector<4x1xf32>
    %149 = vector.extract_strided_slice %135 {offsets = [2, 0], sizes = [1, 128], strides = [1, 1]} : vector<4x128xf32> to vector<1x128xf32>
    %150 = vector.broadcast %148 : vector<4x1xf32> to vector<4x128xf32>
    %151 = vector.broadcast %149 : vector<1x128xf32> to vector<4x128xf32>
    %152 = arith.mulf %150, %151 : vector<4x128xf32>
    %153 = arith.addf %147, %152 : vector<4x128xf32>
    %154 = vector.extract_strided_slice %136 {offsets = [0, 3], sizes = [4, 1], strides = [1, 1]} : vector<4x4xf32> to vector<4x1xf32>
    %155 = vector.extract_strided_slice %135 {offsets = [3, 0], sizes = [1, 128], strides = [1, 1]} : vector<4x128xf32> to vector<1x128xf32>
    %156 = vector.broadcast %154 : vector<4x1xf32> to vector<4x128xf32>
    %157 = vector.broadcast %155 : vector<1x128xf32> to vector<4x128xf32>
    %158 = arith.mulf %156, %157 : vector<4x128xf32>
    %159 = arith.addf %153, %158 : vector<4x128xf32>
    %160 = arith.addf %28, %159 : vector<4x128xf32>
    %cst_20 = arith.constant 0.000000e+00 : f32
    %161 = vector.broadcast %cst_20 : f32 to vector<4x128xf32>
    %162 = arith.maximumf %160, %161 : vector<4x128xf32>
    %163 = math.absf %160 : vector<4x128xf32>
    %cst_21 = arith.constant 0.000000e+00 : f32
    %164 = vector.broadcast %cst_21 : f32 to vector<4x128xf32>
    %165 = arith.subf %164, %163 : vector<4x128xf32>
    %166 = math.exp %165 : vector<4x128xf32>
    %167 = math.log1p %166 : vector<4x128xf32>
    %168 = arith.addf %162, %167 : vector<4x128xf32>
    %169 = arith.addf %134, %168 : vector<4x128xf32>
    %c125_i32 = arith.constant 125 : i32
    %170 = tpu.dynamic_rotate %1 by %c125_i32 dim 1 : vector<4x128xf32>, i32 -> vector<4x128xf32>
    %c0_22 = arith.constant 0 : index
    %c0_23 = arith.constant 0 : index
    %171 = vector.load %arg3[%c0_22, %c0_23] : memref<4x4xf32, #tpu.memory_space<vmem>>, vector<4x4xf32>
    %172 = vector.extract_strided_slice %171 {offsets = [0, 0], sizes = [4, 1], strides = [1, 1]} : vector<4x4xf32> to vector<4x1xf32>
    %173 = vector.extract_strided_slice %170 {offsets = [0, 0], sizes = [1, 128], strides = [1, 1]} : vector<4x128xf32> to vector<1x128xf32>
    %174 = vector.broadcast %172 : vector<4x1xf32> to vector<4x128xf32>
    %175 = vector.broadcast %173 : vector<1x128xf32> to vector<4x128xf32>
    %176 = arith.mulf %174, %175 : vector<4x128xf32>
    %177 = vector.extract_strided_slice %171 {offsets = [0, 1], sizes = [4, 1], strides = [1, 1]} : vector<4x4xf32> to vector<4x1xf32>
    %178 = vector.extract_strided_slice %170 {offsets = [1, 0], sizes = [1, 128], strides = [1, 1]} : vector<4x128xf32> to vector<1x128xf32>
    %179 = vector.broadcast %177 : vector<4x1xf32> to vector<4x128xf32>
    %180 = vector.broadcast %178 : vector<1x128xf32> to vector<4x128xf32>
    %181 = arith.mulf %179, %180 : vector<4x128xf32>
    %182 = arith.addf %176, %181 : vector<4x128xf32>
    %183 = vector.extract_strided_slice %171 {offsets = [0, 2], sizes = [4, 1], strides = [1, 1]} : vector<4x4xf32> to vector<4x1xf32>
    %184 = vector.extract_strided_slice %170 {offsets = [2, 0], sizes = [1, 128], strides = [1, 1]} : vector<4x128xf32> to vector<1x128xf32>
    %185 = vector.broadcast %183 : vector<4x1xf32> to vector<4x128xf32>
    %186 = vector.broadcast %184 : vector<1x128xf32> to vector<4x128xf32>
    %187 = arith.mulf %185, %186 : vector<4x128xf32>
    %188 = arith.addf %182, %187 : vector<4x128xf32>
    %189 = vector.extract_strided_slice %171 {offsets = [0, 3], sizes = [4, 1], strides = [1, 1]} : vector<4x4xf32> to vector<4x1xf32>
    %190 = vector.extract_strided_slice %170 {offsets = [3, 0], sizes = [1, 128], strides = [1, 1]} : vector<4x128xf32> to vector<1x128xf32>
    %191 = vector.broadcast %189 : vector<4x1xf32> to vector<4x128xf32>
    %192 = vector.broadcast %190 : vector<1x128xf32> to vector<4x128xf32>
    %193 = arith.mulf %191, %192 : vector<4x128xf32>
    %194 = arith.addf %188, %193 : vector<4x128xf32>
    %195 = arith.addf %28, %194 : vector<4x128xf32>
    %cst_24 = arith.constant 0.000000e+00 : f32
    %196 = vector.broadcast %cst_24 : f32 to vector<4x128xf32>
    %197 = arith.maximumf %195, %196 : vector<4x128xf32>
    %198 = math.absf %195 : vector<4x128xf32>
    %cst_25 = arith.constant 0.000000e+00 : f32
    %199 = vector.broadcast %cst_25 : f32 to vector<4x128xf32>
    %200 = arith.subf %199, %198 : vector<4x128xf32>
    %201 = math.exp %200 : vector<4x128xf32>
    %202 = math.log1p %201 : vector<4x128xf32>
    %203 = arith.addf %197, %202 : vector<4x128xf32>
    %204 = arith.addf %169, %203 : vector<4x128xf32>
    %c3_i32 = arith.constant 3 : i32
    %205 = tpu.dynamic_rotate %1 by %c3_i32 dim 1 : vector<4x128xf32>, i32 -> vector<4x128xf32>
    %c0_26 = arith.constant 0 : index
    %c0_27 = arith.constant 0 : index
    %206 = vector.load %arg3[%c0_26, %c0_27] : memref<4x4xf32, #tpu.memory_space<vmem>>, vector<4x4xf32>
    %207 = vector.extract_strided_slice %206 {offsets = [0, 0], sizes = [4, 1], strides = [1, 1]} : vector<4x4xf32> to vector<4x1xf32>
    %208 = vector.extract_strided_slice %205 {offsets = [0, 0], sizes = [1, 128], strides = [1, 1]} : vector<4x128xf32> to vector<1x128xf32>
    %209 = vector.broadcast %207 : vector<4x1xf32> to vector<4x128xf32>
    %210 = vector.broadcast %208 : vector<1x128xf32> to vector<4x128xf32>
    %211 = arith.mulf %209, %210 : vector<4x128xf32>
    %212 = vector.extract_strided_slice %206 {offsets = [0, 1], sizes = [4, 1], strides = [1, 1]} : vector<4x4xf32> to vector<4x1xf32>
    %213 = vector.extract_strided_slice %205 {offsets = [1, 0], sizes = [1, 128], strides = [1, 1]} : vector<4x128xf32> to vector<1x128xf32>
    %214 = vector.broadcast %212 : vector<4x1xf32> to vector<4x128xf32>
    %215 = vector.broadcast %213 : vector<1x128xf32> to vector<4x128xf32>
    %216 = arith.mulf %214, %215 : vector<4x128xf32>
    %217 = arith.addf %211, %216 : vector<4x128xf32>
    %218 = vector.extract_strided_slice %206 {offsets = [0, 2], sizes = [4, 1], strides = [1, 1]} : vector<4x4xf32> to vector<4x1xf32>
    %219 = vector.extract_strided_slice %205 {offsets = [2, 0], sizes = [1, 128], strides = [1, 1]} : vector<4x128xf32> to vector<1x128xf32>
    %220 = vector.broadcast %218 : vector<4x1xf32> to vector<4x128xf32>
    %221 = vector.broadcast %219 : vector<1x128xf32> to vector<4x128xf32>
    %222 = arith.mulf %220, %221 : vector<4x128xf32>
    %223 = arith.addf %217, %222 : vector<4x128xf32>
    %224 = vector.extract_strided_slice %206 {offsets = [0, 3], sizes = [4, 1], strides = [1, 1]} : vector<4x4xf32> to vector<4x1xf32>
    %225 = vector.extract_strided_slice %205 {offsets = [3, 0], sizes = [1, 128], strides = [1, 1]} : vector<4x128xf32> to vector<1x128xf32>
    %226 = vector.broadcast %224 : vector<4x1xf32> to vector<4x128xf32>
    %227 = vector.broadcast %225 : vector<1x128xf32> to vector<4x128xf32>
    %228 = arith.mulf %226, %227 : vector<4x128xf32>
    %229 = arith.addf %223, %228 : vector<4x128xf32>
    %230 = arith.addf %28, %229 : vector<4x128xf32>
    %cst_28 = arith.constant 0.000000e+00 : f32
    %231 = vector.broadcast %cst_28 : f32 to vector<4x128xf32>
    %232 = arith.maximumf %230, %231 : vector<4x128xf32>
    %233 = math.absf %230 : vector<4x128xf32>
    %cst_29 = arith.constant 0.000000e+00 : f32
    %234 = vector.broadcast %cst_29 : f32 to vector<4x128xf32>
    %235 = arith.subf %234, %233 : vector<4x128xf32>
    %236 = math.exp %235 : vector<4x128xf32>
    %237 = math.log1p %236 : vector<4x128xf32>
    %238 = arith.addf %232, %237 : vector<4x128xf32>
    %239 = arith.addf %204, %238 : vector<4x128xf32>
    %c123_i32 = arith.constant 123 : i32
    %240 = tpu.dynamic_rotate %1 by %c123_i32 dim 1 : vector<4x128xf32>, i32 -> vector<4x128xf32>
    %c0_30 = arith.constant 0 : index
    %c0_31 = arith.constant 0 : index
    %241 = vector.load %arg3[%c0_30, %c0_31] : memref<4x4xf32, #tpu.memory_space<vmem>>, vector<4x4xf32>
    %242 = vector.extract_strided_slice %241 {offsets = [0, 0], sizes = [4, 1], strides = [1, 1]} : vector<4x4xf32> to vector<4x1xf32>
    %243 = vector.extract_strided_slice %240 {offsets = [0, 0], sizes = [1, 128], strides = [1, 1]} : vector<4x128xf32> to vector<1x128xf32>
    %244 = vector.broadcast %242 : vector<4x1xf32> to vector<4x128xf32>
    %245 = vector.broadcast %243 : vector<1x128xf32> to vector<4x128xf32>
    %246 = arith.mulf %244, %245 : vector<4x128xf32>
    %247 = vector.extract_strided_slice %241 {offsets = [0, 1], sizes = [4, 1], strides = [1, 1]} : vector<4x4xf32> to vector<4x1xf32>
    %248 = vector.extract_strided_slice %240 {offsets = [1, 0], sizes = [1, 128], strides = [1, 1]} : vector<4x128xf32> to vector<1x128xf32>
    %249 = vector.broadcast %247 : vector<4x1xf32> to vector<4x128xf32>
    %250 = vector.broadcast %248 : vector<1x128xf32> to vector<4x128xf32>
    %251 = arith.mulf %249, %250 : vector<4x128xf32>
    %252 = arith.addf %246, %251 : vector<4x128xf32>
    %253 = vector.extract_strided_slice %241 {offsets = [0, 2], sizes = [4, 1], strides = [1, 1]} : vector<4x4xf32> to vector<4x1xf32>
    %254 = vector.extract_strided_slice %240 {offsets = [2, 0], sizes = [1, 128], strides = [1, 1]} : vector<4x128xf32> to vector<1x128xf32>
    %255 = vector.broadcast %253 : vector<4x1xf32> to vector<4x128xf32>
    %256 = vector.broadcast %254 : vector<1x128xf32> to vector<4x128xf32>
    %257 = arith.mulf %255, %256 : vector<4x128xf32>
    %258 = arith.addf %252, %257 : vector<4x128xf32>
    %259 = vector.extract_strided_slice %241 {offsets = [0, 3], sizes = [4, 1], strides = [1, 1]} : vector<4x4xf32> to vector<4x1xf32>
    %260 = vector.extract_strided_slice %240 {offsets = [3, 0], sizes = [1, 128], strides = [1, 1]} : vector<4x128xf32> to vector<1x128xf32>
    %261 = vector.broadcast %259 : vector<4x1xf32> to vector<4x128xf32>
    %262 = vector.broadcast %260 : vector<1x128xf32> to vector<4x128xf32>
    %263 = arith.mulf %261, %262 : vector<4x128xf32>
    %264 = arith.addf %258, %263 : vector<4x128xf32>
    %265 = arith.addf %28, %264 : vector<4x128xf32>
    %cst_32 = arith.constant 0.000000e+00 : f32
    %266 = vector.broadcast %cst_32 : f32 to vector<4x128xf32>
    %267 = arith.maximumf %265, %266 : vector<4x128xf32>
    %268 = math.absf %265 : vector<4x128xf32>
    %cst_33 = arith.constant 0.000000e+00 : f32
    %269 = vector.broadcast %cst_33 : f32 to vector<4x128xf32>
    %270 = arith.subf %269, %268 : vector<4x128xf32>
    %271 = math.exp %270 : vector<4x128xf32>
    %272 = math.log1p %271 : vector<4x128xf32>
    %273 = arith.addf %267, %272 : vector<4x128xf32>
    %274 = arith.addf %239, %273 : vector<4x128xf32>
    %c5_i32 = arith.constant 5 : i32
    %275 = tpu.dynamic_rotate %1 by %c5_i32 dim 1 : vector<4x128xf32>, i32 -> vector<4x128xf32>
    %c0_34 = arith.constant 0 : index
    %c0_35 = arith.constant 0 : index
    %276 = vector.load %arg3[%c0_34, %c0_35] : memref<4x4xf32, #tpu.memory_space<vmem>>, vector<4x4xf32>
    %277 = vector.extract_strided_slice %276 {offsets = [0, 0], sizes = [4, 1], strides = [1, 1]} : vector<4x4xf32> to vector<4x1xf32>
    %278 = vector.extract_strided_slice %275 {offsets = [0, 0], sizes = [1, 128], strides = [1, 1]} : vector<4x128xf32> to vector<1x128xf32>
    %279 = vector.broadcast %277 : vector<4x1xf32> to vector<4x128xf32>
    %280 = vector.broadcast %278 : vector<1x128xf32> to vector<4x128xf32>
    %281 = arith.mulf %279, %280 : vector<4x128xf32>
    %282 = vector.extract_strided_slice %276 {offsets = [0, 1], sizes = [4, 1], strides = [1, 1]} : vector<4x4xf32> to vector<4x1xf32>
    %283 = vector.extract_strided_slice %275 {offsets = [1, 0], sizes = [1, 128], strides = [1, 1]} : vector<4x128xf32> to vector<1x128xf32>
    %284 = vector.broadcast %282 : vector<4x1xf32> to vector<4x128xf32>
    %285 = vector.broadcast %283 : vector<1x128xf32> to vector<4x128xf32>
    %286 = arith.mulf %284, %285 : vector<4x128xf32>
    %287 = arith.addf %281, %286 : vector<4x128xf32>
    %288 = vector.extract_strided_slice %276 {offsets = [0, 2], sizes = [4, 1], strides = [1, 1]} : vector<4x4xf32> to vector<4x1xf32>
    %289 = vector.extract_strided_slice %275 {offsets = [2, 0], sizes = [1, 128], strides = [1, 1]} : vector<4x128xf32> to vector<1x128xf32>
    %290 = vector.broadcast %288 : vector<4x1xf32> to vector<4x128xf32>
    %291 = vector.broadcast %289 : vector<1x128xf32> to vector<4x128xf32>
    %292 = arith.mulf %290, %291 : vector<4x128xf32>
    %293 = arith.addf %287, %292 : vector<4x128xf32>
    %294 = vector.extract_strided_slice %276 {offsets = [0, 3], sizes = [4, 1], strides = [1, 1]} : vector<4x4xf32> to vector<4x1xf32>
    %295 = vector.extract_strided_slice %275 {offsets = [3, 0], sizes = [1, 128], strides = [1, 1]} : vector<4x128xf32> to vector<1x128xf32>
    %296 = vector.broadcast %294 : vector<4x1xf32> to vector<4x128xf32>
    %297 = vector.broadcast %295 : vector<1x128xf32> to vector<4x128xf32>
    %298 = arith.mulf %296, %297 : vector<4x128xf32>
    %299 = arith.addf %293, %298 : vector<4x128xf32>
    %300 = arith.addf %28, %299 : vector<4x128xf32>
    %cst_36 = arith.constant 0.000000e+00 : f32
    %301 = vector.broadcast %cst_36 : f32 to vector<4x128xf32>
    %302 = arith.maximumf %300, %301 : vector<4x128xf32>
    %303 = math.absf %300 : vector<4x128xf32>
    %cst_37 = arith.constant 0.000000e+00 : f32
    %304 = vector.broadcast %cst_37 : f32 to vector<4x128xf32>
    %305 = arith.subf %304, %303 : vector<4x128xf32>
    %306 = math.exp %305 : vector<4x128xf32>
    %307 = math.log1p %306 : vector<4x128xf32>
    %308 = arith.addf %302, %307 : vector<4x128xf32>
    %309 = arith.addf %274, %308 : vector<4x128xf32>
    %c0_38 = arith.constant 0 : index
    %c0_39 = arith.constant 0 : index
    %c0_40 = arith.constant 0 : index
    %310 = vector.load %arg5[%c0_38, %c0_39, %c0_40] : memref<1x4x128xf32, #tpu.memory_space<vmem>>, vector<1x4x128xf32>
    %311 = vector.shape_cast %310 : vector<1x4x128xf32> to vector<4x128xf32>
    %312 = vector.shape_cast %309 : vector<4x128xf32> to vector<1x4x128xf32>
    tpu.vector_store %arg5[%c0_38, %c0_39, %c0_40], %312 {strides = array<i32>} : memref<1x4x128xf32, #tpu.memory_space<vmem>>, vector<1x4x128xf32>,
    return
  }
  func.func @transform_0(%arg0: i32) -> (i32, i32, i32) {
    %c0_i32 = arith.constant 0 : i32
    %c0_i32_0 = arith.constant 0 : i32
    %c0_i32_1 = arith.constant 0 : i32
    return %arg0, %c0_i32, %c0_i32_0 : i32, i32, i32
  }
  func.func @transform_1(%arg0: i32) -> (i32, i32) {
    %c0_i32 = arith.constant 0 : i32
    %c0_i32_0 = arith.constant 0 : i32
    %c0_i32_1 = arith.constant 0 : i32
    return %c0_i32, %c0_i32_0 : i32, i32
  }
  func.func @transform_2(%arg0: i32) -> (i32, i32) {
    %c0_i32 = arith.constant 0 : i32
    %c0_i32_0 = arith.constant 0 : i32
    %c0_i32_1 = arith.constant 0 : i32
    return %c0_i32, %c0_i32_0 : i32, i32
  }
  func.func @transform_3(%arg0: i32) -> (i32, i32) {
    %c0_i32 = arith.constant 0 : i32
    %c0_i32_0 = arith.constant 0 : i32
    %c0_i32_1 = arith.constant 0 : i32
    return %c0_i32, %c0_i32_0 : i32, i32
  }
  func.func @transform_4(%arg0: i32) -> (i32, i32, i32) {
    %c0_i32 = arith.constant 0 : i32
    %c0_i32_0 = arith.constant 0 : i32
    %c0_i32_1 = arith.constant 0 : i32
    return %arg0, %c0_i32, %c0_i32_0 : i32, i32, i32
  }
}

</mosaic_0001>

<llo_original>
// kernel: tpu_custom_call.1
$region0: #{tpu_custom_call.1}
  #allocation0 [shape = 'u32[]', space=smem, size = 0x4, offset = 0x4, fixed_abs, tag = 'smem constant byte address 0x4 - core index']
  #allocation1 [shape = 'u32[144,128]{1,0:T(1,128)}', space=vmem, size = 0x12000, scoped, tag = 'internal scratch']
  %s0 = inlined_call_operand.hbm [shape: f32[2,4,128], index: 0, kind: input, shape index: {}]
  %s1 = inlined_call_operand.vmem [shape: f32[4,4], index: 1, kind: input, shape index: {}]
  %s2 = inlined_call_operand.vmem [shape: f32[4,4], index: 2, kind: input, shape index: {}]
  %s3 = inlined_call_operand.vmem [shape: f32[4,1], index: 3, kind: input, shape index: {}]
  %s4 = inlined_call_operand.hbm [shape: f32[2,4,128], index: 4, kind: output, shape index: {}]
  %s5 = sld [smem:[#allocation0]]
  $region53: #{tpu_custom_call.1} parent=0
    _
  %s7 = ssub.s32 1, %s5
  %s8 = scalar_select 0, %s7, %s5
  $region1: #{tpu_custom_call.1} parent=0
    #allocation2 [shape = 'u8[4096]{0}', space=vmem, size = 0x1000, scoped, tag = 'input window, operand 0']
    #allocation3 [shape = 's32[2]{0}', space=sflag, size = 0x8, scoped, tag = 'scoped memory for tpu_custom_call.1']
    #allocation4 [shape = 's32[2]{0}', space=sflag, size = 0x8, scoped, tag = 'scoped memory for tpu_custom_call.1']
    #allocation5 [shape = 'u8[4096]{0}', space=vmem, size = 0x1000, scoped, tag = 'output window, operand 0']
    %9 = vsyncpa [#allocation3], 0
    %s10 = scalar_lea.sflag [#allocation3], 1
    %11 = vsyncpa %s10, 0
    %12 = vsyncpa [#allocation4], 0
    %s13 = scalar_lea.sflag [#allocation4], 1
    %14 = vsyncpa %s13, 0
    loop: start=0, step=1, limit=4
    $region2: #{tpu_custom_call.1} parent=1 // loop_pre_header
      _
    $region3: #{tpu_custom_call.1} parent=1 // loop_header
      %s16 = sphi 0, %s20
      %p17 = scmp.ge.s32.totalorder %s16, 4
      %s26 = sphi 0, %s28
      %s29 = sphi 0, %s26
      %s30 = sphi 0, %s29
      %s46 = sphi 0, %s30
      %s50 = sphi 0, %s50
      %s52 = sphi 0, %s50
      %s53 = sphi 0, %s52
      %s67 = sphi 0, %s53
      %s71 = sphi 0, %s71
      %s73 = sphi 0, %s71
      %s74 = sphi 0, %s73
      %s88 = sphi 0, %s74
      %s92 = sphi 0, %s92
      %s94 = sphi 0, %s92
      %s95 = sphi 0, %s94
      %s109 = sphi 0, %s95
      %s115 = sphi 0, %s117
      %s118 = sphi 0, %s115
      %s119 = sphi 0, %s118
      %s135 = sphi 0, %s119
    $region4: #{tpu_custom_call.1} parent=1 // loop_header_branch
      %19 = sbr.rel (%p17) target = $region8
    $region5: #{tpu_custom_call.1} parent=1 // loop_body
      %s21 = ssub.s32 %s16, 1
      %s22 = ssub.s32 %s16, 2
      %s23 = sadd.s32 %s16, 1
      %s24 = ssub.s32 %s16, %s23
      %p25 = scmp.eq.s32.totalorder %s24, 0
      %s27 = sadd.s32 %s26, 1
      %s28 = scalar_select %p25, %s26, %s27
      %p31 = pneg %p25
      %p32 = scmp.eq.s32.totalorder %s16, 1
      %p33 = por %p31, %p32
      %p34 = scmp.ne.s32.totalorder %s26, %s29
      %p35 = scmp.eq.s32.totalorder %s16, 0
      %p36 = por %p34, %p35
      %p37 = scmp.ne.s32.totalorder %s26, %s29
      %p38 = scmp.eq.s32.totalorder %s21, 1
      %p39 = por %p37, %p38
      %p40 = scmp.ne.s32.totalorder %s29, %s30
      %p41 = scmp.eq.s32.totalorder %s21, 0
      %p42 = por %p40, %p41
      %p43 = scmp.ne.s32.totalorder %s29, %s30
      %p44 = scmp.eq.s32.totalorder %s22, 1
      %p45 = por %p43, %p44
      %p47 = scmp.ne.s32.totalorder %s30, %s46
      %p48 = scmp.eq.s32.totalorder %s22, 0
      %p49 = por %p47, %p48
      %s51 = sadd.s32 %s50, 1
      %p54 = scmp.eq.s32.totalorder %s16, 1
      %p55 = scmp.ne.s32.totalorder %s50, %s52
      %p56 = scmp.eq.s32.totalorder %s16, 0
      %p57 = por %p55, %p56
      %p58 = scmp.ne.s32.totalorder %s50, %s52
      %p59 = scmp.eq.s32.totalorder %s21, 1
      %p60 = por %p58, %p59
      %p61 = scmp.ne.s32.totalorder %s52, %s53
      %p62 = scmp.eq.s32.totalorder %s21, 0
      %p63 = por %p61, %p62
      %p64 = scmp.ne.s32.totalorder %s52, %s53
      %p65 = scmp.eq.s32.totalorder %s22, 1
      %p66 = por %p64, %p65
      %p68 = scmp.ne.s32.totalorder %s53, %s67
      %p69 = scmp.eq.s32.totalorder %s22, 0
      %p70 = por %p68, %p69
      %s72 = sadd.s32 %s71, 1
      %p75 = scmp.eq.s32.totalorder %s16, 1
      %p76 = scmp.ne.s32.totalorder %s71, %s73
      %p77 = scmp.eq.s32.totalorder %s16, 0
      %p78 = por %p76, %p77
      %p79 = scmp.ne.s32.totalorder %s71, %s73
      %p80 = scmp.eq.s32.totalorder %s21, 1
      %p81 = por %p79, %p80
      %p82 = scmp.ne.s32.totalorder %s73, %s74
      %p83 = scmp.eq.s32.totalorder %s21, 0
      %p84 = por %p82, %p83
      %p85 = scmp.ne.s32.totalorder %s73, %s74
      %p86 = scmp.eq.s32.totalorder %s22, 1
      %p87 = por %p85, %p86
      %p89 = scmp.ne.s32.totalorder %s74, %s88
      %p90 = scmp.eq.s32.totalorder %s22, 0
      %p91 = por %p89, %p90
      %s93 = sadd.s32 %s92, 1
      %p96 = scmp.eq.s32.totalorder %s16, 1
      %p97 = scmp.ne.s32.totalorder %s92, %s94
      %p98 = scmp.eq.s32.totalorder %s16, 0
      %p99 = por %p97, %p98
      %p100 = scmp.ne.s32.totalorder %s92, %s94
      %p101 = scmp.eq.s32.totalorder %s21, 1
      %p102 = por %p100, %p101
      %p103 = scmp.ne.s32.totalorder %s94, %s95
      %p104 = scmp.eq.s32.totalorder %s21, 0
      %p105 = por %p103, %p104
      %p106 = scmp.ne.s32.totalorder %s94, %s95
      %p107 = scmp.eq.s32.totalorder %s22, 1
      %p108 = por %p106, %p107
      %p110 = scmp.ne.s32.totalorder %s95, %s109
      %p111 = scmp.eq.s32.totalorder %s22, 0
      %p112 = por %p110, %p111
      %s113 = ssub.s32 %s16, %s23
      %p114 = scmp.eq.s32.totalorder %s113, 0
      %s116 = sadd.s32 %s115, 1
      %s117 = scalar_select %p114, %s115, %s116
      %p120 = pneg %p114
      %p121 = scmp.eq.s32.totalorder %s16, 1
      %p122 = por %p120, %p121
      %p123 = scmp.ne.s32.totalorder %s115, %s118
      %p124 = scmp.eq.s32.totalorder %s16, 0
      %p125 = por %p123, %p124
      %p126 = scmp.ne.s32.totalorder %s115, %s118
      %p127 = scmp.eq.s32.totalorder %s21, 1
      %p128 = por %p126, %p127
      %p129 = scmp.ne.s32.totalorder %s118, %s119
      %p130 = scmp.eq.s32.totalorder %s21, 0
      %p131 = por %p129, %p130
      %p132 = scmp.ne.s32.totalorder %s118, %s119
      %p133 = scmp.eq.s32.totalorder %s22, 1
      %p134 = por %p132, %p133
      %p136 = scmp.ne.s32.totalorder %s119, %s135
      %p137 = scmp.eq.s32.totalorder %s22, 0
      %p138 = por %p136, %p137
      %p139 = scmp.le.s32.totalorder 1, %s16
      %p140 = scmp.lt.s32.totalorder %s16, 3
      %p141 = pnand %p139, %p140
      %p142 = pneg %p141
      // Predicated region
      $region9: #{tpu_custom_call.1} parent=5 // pred_check
        _
      $region10: #{tpu_custom_call.1} parent=5 // pred_check_branch
        %144 = sbr.rel (%p141) target = $region12
      $region11: #{tpu_custom_call.1} parent=5 // pred_region
        %s145 = ssub.s32 %s16, 1
        // Predicated region
        $region13: #{tpu_custom_call.1} parent=11 // pred_check
          %p146 = pneg %p63
        $region14: #{tpu_custom_call.1} parent=11 // pred_check_branch
          %148 = sbr.rel (%p146) target = $region16
        $region15: #{tpu_custom_call.1} parent=11 // pred_region
          _
        $region16: #{tpu_custom_call.1} parent=11 // pred_fallthru
          _
        // Predicated region
        $region17: #{tpu_custom_call.1} parent=11 // pred_check
          %p149 = pneg %p84
        $region18: #{tpu_custom_call.1} parent=11 // pred_check_branch
          %151 = sbr.rel (%p149) target = $region20
        $region19: #{tpu_custom_call.1} parent=11 // pred_region
          _
        $region20: #{tpu_custom_call.1} parent=11 // pred_fallthru
          _
        // Predicated region
        $region21: #{tpu_custom_call.1} parent=11 // pred_check
          %p152 = pneg %p105
        $region22: #{tpu_custom_call.1} parent=11 // pred_check_branch
          %154 = sbr.rel (%p152) target = $region24
        $region23: #{tpu_custom_call.1} parent=11 // pred_region
          _
        $region24: #{tpu_custom_call.1} parent=11 // pred_fallthru
          _
      $region12: #{tpu_custom_call.1} parent=5 // pred_fallthru
        _
      %p155 = scmp.lt.s32.totalorder %s16, 2
      // Predicated region
      $region25: #{tpu_custom_call.1} parent=5 // pred_check
        %p156 = pneg %p155
      $region26: #{tpu_custom_call.1} parent=5 // pred_check_branch
        %158 = sbr.rel (%p156) target = $region28
      $region27: #{tpu_custom_call.1} parent=5 // pred_region
        // Predicated region
        $region29: #{tpu_custom_call.1} parent=27 // pred_check
          %p159 = pneg %p36
        $region30: #{tpu_custom_call.1} parent=27 // pred_check_branch
          %161 = sbr.rel (%p159) target = $region32
        $region31: #{tpu_custom_call.1} parent=27 // pred_region
          %s162 = sand.u32 %s26, 1
          %s163 = scalar_lea.sflag [#allocation3], %s162
          %s164 = sand.u32 %s26, 1
          %s165 = smul.addr %s164, 4
          %s166 = scalar_lea.vmem [#allocation2], %s165
          %s168 = ssub.s32 64, 64
          %169 = vsyncadd %s163, %s168
          %s170 = smul.addr %s16, 64
          %s171 = scalar_lea.hbm %s0, %s170
          %s173 = sshll.u32 %s166, 4
          %s174 = int_to_ptr.vmem [resolvable:$true] %s173
          %176 = dma.hbm_to_vmem [thread:$0]  %s171, 64, %s174, %s163
        $region32: #{tpu_custom_call.1} parent=27 // pred_fallthru
          _
      $region28: #{tpu_custom_call.1} parent=5 // pred_fallthru
        _
      %p177 = scmp.le.s32.totalorder 1, %s16
      %p178 = scmp.lt.s32.totalorder %s16, 3
      %p179 = pnand %p177, %p178
      %p180 = pneg %p179
      // Predicated region
      $region33: #{tpu_custom_call.1} parent=5 // pred_check
        _
      $region34: #{tpu_custom_call.1} parent=5 // pred_check_branch
        %182 = sbr.rel (%p179) target = $region36
      $region35: #{tpu_custom_call.1} parent=5 // pred_region
        %s183 = ssub.s32 %s16, 1
        %s184 = sand.u32 %s29, 1
        %s185 = scalar_lea.sflag [#allocation3], %s184
        %s186 = sand.u32 %s29, 1
        %s187 = smul.addr %s186, 4
        %s188 = scalar_lea.vmem [#allocation2], %s187
        // Predicated region
        $region37: #{tpu_custom_call.1} parent=35 // pred_check
          %p189 = pneg %p42
        $region38: #{tpu_custom_call.1} parent=35 // pred_check_branch
          %191 = sbr.rel (%p189) target = $region40
        $region39: #{tpu_custom_call.1} parent=35 // pred_region
          %192 = dma.done %s185, 64
        $region40: #{tpu_custom_call.1} parent=35 // pred_fallthru
          _
        %s193 = sand.u32 %s29, 1
        %s194 = scalar_lea.sflag [#allocation3], %s193
        %s195 = sand.u32 %s29, 1
        %s196 = smul.addr %s195, 4
        %s197 = scalar_lea.vmem [#allocation2], %s196
        %p198 = pneg %p42
        %p199 = pneg %p39
        %p200 = pneg %p63
        %p201 = pneg %p60
        %p202 = pneg %p84
        %p203 = pneg %p81
        %p204 = pneg %p105
        %p205 = pneg %p102
        %p206 = pneg %p131
        %p207 = pneg %p128
        %s208 = sand.u32 %s118, 1
        %s209 = scalar_lea.sflag [#allocation4], %s208
        %s210 = sand.u32 %s118, 1
        %s211 = smul.addr %s210, 4
        %s212 = scalar_lea.vmem [#allocation5], %s211
        %v213 = vld [vmem:[%s188] sm:$0xf]
        %v214 = vld [vmem:[%s1] sm:$0xf]
        %216 = vset.pattern.permute.xlu0 0
        %217 = vperm.xlu0 %216, %v214
        %v218 = vpop.permute.xlu0 %217
        %v220 = vlaneseq
        %v221 = vshrl.u32 %v220, 7
        %v222 = vsub.s32 0, %v221
        %v223 = vrot.slane %v213, %v222
        %v224 = vmul.f32 %v218, %v223
        %225 = vset.pattern.permute.xlu0 1
        %226 = vperm.xlu0 %225, %v214
        %v227 = vpop.permute.xlu0 %226
        %v229 = vlaneseq
        %v230 = vshrl.u32 %v229, 7
        %v231 = vsub.s32 1, %v230
        %v232 = vrot.slane %v213, %v231
        %v233 = vmul.f32 %v227, %v232
        %v234 = vadd.f32 %v224, %v233
        %235 = vset.pattern.permute.xlu0 2
        %236 = vperm.xlu0 %235, %v214
        %v237 = vpop.permute.xlu0 %236
        %v239 = vlaneseq
        %v240 = vshrl.u32 %v239, 7
        %v241 = vsub.s32 2, %v240
        %v242 = vrot.slane %v213, %v241
        %v243 = vmul.f32 %v237, %v242
        %v244 = vadd.f32 %v234, %v243
        %245 = vset.pattern.permute.xlu0 3
        %246 = vperm.xlu0 %245, %v214
        %v247 = vpop.permute.xlu0 %246
        %v249 = vlaneseq
        %v250 = vshrl.u32 %v249, 7
        %v251 = vsub.s32 3, %v250
        %v252 = vrot.slane %v213, %v251
        %v253 = vmul.f32 %v247, %v252
        %v254 = vadd.f32 %v244, %v253
        %v255 = vld [vmem:[%s3] sm:$0xf]
        %257 = vset.pattern.permute.xlu0 0
        %258 = vperm.xlu0 %257, %v255
        %v259 = vpop.permute.xlu0 %258
        %v261 = vadd.f32 %v254, %v259
        %262 = vrot.lane.b32.xlu0 %v213, 127
        %v263 = vpop.permute.xlu0 %262
        %v264 = vld [vmem:[%s2] sm:$0xf]
        %266 = vset.pattern.permute.xlu0 0
        %267 = vperm.xlu0 %266, %v264
        %v268 = vpop.permute.xlu0 %267
        %v270 = vlaneseq
        %v271 = vshrl.u32 %v270, 7
        %v272 = vsub.s32 0, %v271
        %v273 = vrot.slane %v263, %v272
        %v274 = vmul.f32 %v268, %v273
        %275 = vset.pattern.permute.xlu0 1
        %276 = vperm.xlu0 %275, %v264
        %v277 = vpop.permute.xlu0 %276
        %v279 = vlaneseq
        %v280 = vshrl.u32 %v279, 7
        %v281 = vsub.s32 1, %v280
        %v282 = vrot.slane %v263, %v281
        %v283 = vmul.f32 %v277, %v282
        %v284 = vadd.f32 %v274, %v283
        %285 = vset.pattern.permute.xlu0 2
        %286 = vperm.xlu0 %285, %v264
        %v287 = vpop.permute.xlu0 %286
        %v289 = vlaneseq
        %v290 = vshrl.u32 %v289, 7
        %v291 = vsub.s32 2, %v290
        %v292 = vrot.slane %v263, %v291
        %v293 = vmul.f32 %v287, %v292
        %v294 = vadd.f32 %v284, %v293
        %295 = vset.pattern.permute.xlu0 3
        %296 = vperm.xlu0 %295, %v264
        %v297 = vpop.permute.xlu0 %296
        %v299 = vlaneseq
        %v300 = vshrl.u32 %v299, 7
        %v301 = vsub.s32 3, %v300
        %v302 = vrot.slane %v263, %v301
        %v303 = vmul.f32 %v297, %v302
        %v304 = vadd.f32 %v294, %v303
        %v305 = vadd.f32 %v261, %v304
        %v306 = vmax.f32 %v305, 0.0
        %v307 = vand.u32 2147483647, %v305
        %v308 = vsub.f32 0.0, %v307
        %v309 = vmul.f32 %v308, 1.442695
        %v310 = vpow.pop %v309
        %v311 = vadd.f32 %v310, 1.0
        %v312 = vlog2.pop %v311
        %v313 = vmul.f32 %v312, 0.6931472
        %v314 = vmul.f32 -0.5, %v310
        %v315 = vadd.f32 %v314, 1.0
        %v316 = vmul.f32 %v315, %v310
        %v317 = vand.u32 2147483647, %v310
        %vm318 = vcmp.lt.f32.partialorder %v317, 0.0004427343
        %v319 = vsel %vm318, %v316, %v313
        %v320 = vadd.f32 %v306, %v319
        %v321 = vadd.f32 %v320, 0.0
        %322 = vrot.lane.b32.xlu0 %v213, 1
        %v323 = vpop.permute.xlu0 %322
        %v324 = vlaneseq
        %v325 = vshrl.u32 %v324, 7
        %v326 = vsub.s32 0, %v325
        %v327 = vrot.slane %v323, %v326
        %v328 = vmul.f32 %v268, %v327
        %v329 = vlaneseq
        %v330 = vshrl.u32 %v329, 7
        %v331 = vsub.s32 1, %v330
        %v332 = vrot.slane %v323, %v331
        %v333 = vmul.f32 %v277, %v332
        %v334 = vadd.f32 %v328, %v333
        %v335 = vlaneseq
        %v336 = vshrl.u32 %v335, 7
        %v337 = vsub.s32 2, %v336
        %v338 = vrot.slane %v323, %v337
        %v339 = vmul.f32 %v287, %v338
        %v340 = vadd.f32 %v334, %v339
        %v341 = vlaneseq
        %v342 = vshrl.u32 %v341, 7
        %v343 = vsub.s32 3, %v342
        %v344 = vrot.slane %v323, %v343
        %v345 = vmul.f32 %v297, %v344
        %v346 = vadd.f32 %v340, %v345
        %v347 = vadd.f32 %v261, %v346
        %v348 = vmax.f32 %v347, 0.0
        %v349 = vand.u32 2147483647, %v347
        %v350 = vsub.f32 0.0, %v349
        %v351 = vmul.f32 %v350, 1.442695
        %v352 = vpow.pop %v351
        %v353 = vadd.f32 %v352, 1.0
        %v354 = vlog2.pop %v353
        %v355 = vmul.f32 %v354, 0.6931472
        %v356 = vmul.f32 -0.5, %v352
        %v357 = vadd.f32 %v356, 1.0
        %v358 = vmul.f32 %v357, %v352
        %v359 = vand.u32 2147483647, %v352
        %vm360 = vcmp.lt.f32.partialorder %v359, 0.0004427343
        %v361 = vsel %vm360, %v358, %v355
        %v362 = vadd.f32 %v348, %v361
        %v363 = vadd.f32 %v321, %v362
        %364 = vrot.lane.b32.xlu0 %v213, 126
        %v365 = vpop.permute.xlu0 %364
        %v366 = vlaneseq
        %v367 = vshrl.u32 %v366, 7
        %v368 = vsub.s32 0, %v367
        %v369 = vrot.slane %v365, %v368
        %v370 = vmul.f32 %v268, %v369
        %v371 = vlaneseq
        %v372 = vshrl.u32 %v371, 7
        %v373 = vsub.s32 1, %v372
        %v374 = vrot.slane %v365, %v373
        %v375 = vmul.f32 %v277, %v374
        %v376 = vadd.f32 %v370, %v375
        %v377 = vlaneseq
        %v378 = vshrl.u32 %v377, 7
        %v379 = vsub.s32 2, %v378
        %v380 = vrot.slane %v365, %v379
        %v381 = vmul.f32 %v287, %v380
        %v382 = vadd.f32 %v376, %v381
        %v383 = vlaneseq
        %v384 = vshrl.u32 %v383, 7
        %v385 = vsub.s32 3, %v384
        %v386 = vrot.slane %v365, %v385
        %v387 = vmul.f32 %v297, %v386
        %v388 = vadd.f32 %v382, %v387
        %v389 = vadd.f32 %v261, %v388
        %v390 = vmax.f32 %v389, 0.0
        %v391 = vand.u32 2147483647, %v389
        %v392 = vsub.f32 0.0, %v391
        %v393 = vmul.f32 %v392, 1.442695
        %v394 = vpow.pop %v393
        %v395 = vadd.f32 %v394, 1.0
        %v396 = vlog2.pop %v395
        %v397 = vmul.f32 %v396, 0.6931472
        %v398 = vmul.f32 -0.5, %v394
        %v399 = vadd.f32 %v398, 1.0
        %v400 = vmul.f32 %v399, %v394
        %v401 = vand.u32 2147483647, %v394
        %vm402 = vcmp.lt.f32.partialorder %v401, 0.0004427343
        %v403 = vsel %vm402, %v400, %v397
        %v404 = vadd.f32 %v390, %v403
        %v405 = vadd.f32 %v363, %v404
        %406 = vrot.lane.b32.xlu0 %v213, 2
        %v407 = vpop.permute.xlu0 %406
        %v408 = vlaneseq
        %v409 = vshrl.u32 %v408, 7
        %v410 = vsub.s32 0, %v409
        %v411 = vrot.slane %v407, %v410
        %v412 = vmul.f32 %v268, %v411
        %v413 = vlaneseq
        %v414 = vshrl.u32 %v413, 7
        %v415 = vsub.s32 1, %v414
        %v416 = vrot.slane %v407, %v415
        %v417 = vmul.f32 %v277, %v416
        %v418 = vadd.f32 %v412, %v417
        %v419 = vlaneseq
        %v420 = vshrl.u32 %v419, 7
        %v421 = vsub.s32 2, %v420
        %v422 = vrot.slane %v407, %v421
        %v423 = vmul.f32 %v287, %v422
        %v424 = vadd.f32 %v418, %v423
        %v425 = vlaneseq
        %v426 = vshrl.u32 %v425, 7
        %v427 = vsub.s32 3, %v426
        %v428 = vrot.slane %v407, %v427
        %v429 = vmul.f32 %v297, %v428
        %v430 = vadd.f32 %v424, %v429
        %v431 = vadd.f32 %v261, %v430
        %v432 = vmax.f32 %v431, 0.0
        %v433 = vand.u32 2147483647, %v431
        %v434 = vsub.f32 0.0, %v433
        %v435 = vmul.f32 %v434, 1.442695
        %v436 = vpow.pop %v435
        %v437 = vadd.f32 %v436, 1.0
        %v438 = vlog2.pop %v437
        %v439 = vmul.f32 %v438, 0.6931472
        %v440 = vmul.f32 -0.5, %v436
        %v441 = vadd.f32 %v440, 1.0
        %v442 = vmul.f32 %v441, %v436
        %v443 = vand.u32 2147483647, %v436
        %vm444 = vcmp.lt.f32.partialorder %v443, 0.0004427343
        %v445 = vsel %vm444, %v442, %v439
        %v446 = vadd.f32 %v432, %v445
        %v447 = vadd.f32 %v405, %v446
        %448 = vrot.lane.b32.xlu0 %v213, 125
        %v449 = vpop.permute.xlu0 %448
        %v450 = vlaneseq
        %v451 = vshrl.u32 %v450, 7
        %v452 = vsub.s32 0, %v451
        %v453 = vrot.slane %v449, %v452
        %v454 = vmul.f32 %v268, %v453
        %v455 = vlaneseq
        %v456 = vshrl.u32 %v455, 7
        %v457 = vsub.s32 1, %v456
        %v458 = vrot.slane %v449, %v457
        %v459 = vmul.f32 %v277, %v458
        %v460 = vadd.f32 %v454, %v459
        %v461 = vlaneseq
        %v462 = vshrl.u32 %v461, 7
        %v463 = vsub.s32 2, %v462
        %v464 = vrot.slane %v449, %v463
        %v465 = vmul.f32 %v287, %v464
        %v466 = vadd.f32 %v460, %v465
        %v467 = vlaneseq
        %v468 = vshrl.u32 %v467, 7
        %v469 = vsub.s32 3, %v468
        %v470 = vrot.slane %v449, %v469
        %v471 = vmul.f32 %v297, %v470
        %v472 = vadd.f32 %v466, %v471
        %v473 = vadd.f32 %v261, %v472
        %v474 = vmax.f32 %v473, 0.0
        %v475 = vand.u32 2147483647, %v473
        %v476 = vsub.f32 0.0, %v475
        %v477 = vmul.f32 %v476, 1.442695
        %v478 = vpow.pop %v477
        %v479 = vadd.f32 %v478, 1.0
        %v480 = vlog2.pop %v479
        %v481 = vmul.f32 %v480, 0.6931472
        %v482 = vmul.f32 -0.5, %v478
        %v483 = vadd.f32 %v482, 1.0
        %v484 = vmul.f32 %v483, %v478
        %v485 = vand.u32 2147483647, %v478
        %vm486 = vcmp.lt.f32.partialorder %v485, 0.0004427343
        %v487 = vsel %vm486, %v484, %v481
        %v488 = vadd.f32 %v474, %v487
        %v489 = vadd.f32 %v447, %v488
        %490 = vrot.lane.b32.xlu0 %v213, 3
        %v491 = vpop.permute.xlu0 %490
        %v492 = vlaneseq
        %v493 = vshrl.u32 %v492, 7
        %v494 = vsub.s32 0, %v493
        %v495 = vrot.slane %v491, %v494
        %v496 = vmul.f32 %v268, %v495
        %v497 = vlaneseq
        %v498 = vshrl.u32 %v497, 7
        %v499 = vsub.s32 1, %v498
        %v500 = vrot.slane %v491, %v499
        %v501 = vmul.f32 %v277, %v500
        %v502 = vadd.f32 %v496, %v501
        %v503 = vlaneseq
        %v504 = vshrl.u32 %v503, 7
        %v505 = vsub.s32 2, %v504
        %v506 = vrot.slane %v491, %v505
        %v507 = vmul.f32 %v287, %v506
        %v508 = vadd.f32 %v502, %v507
        %v509 = vlaneseq
        %v510 = vshrl.u32 %v509, 7
        %v511 = vsub.s32 3, %v510
        %v512 = vrot.slane %v491, %v511
        %v513 = vmul.f32 %v297, %v512
        %v514 = vadd.f32 %v508, %v513
        %v515 = vadd.f32 %v261, %v514
        %v516 = vmax.f32 %v515, 0.0
        %v517 = vand.u32 2147483647, %v515
        %v518 = vsub.f32 0.0, %v517
        %v519 = vmul.f32 %v518, 1.442695
        %v520 = vpow.pop %v519
        %v521 = vadd.f32 %v520, 1.0
        %v522 = vlog2.pop %v521
        %v523 = vmul.f32 %v522, 0.6931472
        %v524 = vmul.f32 -0.5, %v520
        %v525 = vadd.f32 %v524, 1.0
        %v526 = vmul.f32 %v525, %v520
        %v527 = vand.u32 2147483647, %v520
        %vm528 = vcmp.lt.f32.partialorder %v527, 0.0004427343
        %v529 = vsel %vm528, %v526, %v523
        %v530 = vadd.f32 %v516, %v529
        %v531 = vadd.f32 %v489, %v530
        %532 = vrot.lane.b32.xlu0 %v213, 123
        %v533 = vpop.permute.xlu0 %532
        %v534 = vlaneseq
        %v535 = vshrl.u32 %v534, 7
        %v536 = vsub.s32 0, %v535
        %v537 = vrot.slane %v533, %v536
        %v538 = vmul.f32 %v268, %v537
        %v539 = vlaneseq
        %v540 = vshrl.u32 %v539, 7
        %v541 = vsub.s32 1, %v540
        %v542 = vrot.slane %v533, %v541
        %v543 = vmul.f32 %v277, %v542
        %v544 = vadd.f32 %v538, %v543
        %v545 = vlaneseq
        %v546 = vshrl.u32 %v545, 7
        %v547 = vsub.s32 2, %v546
        %v548 = vrot.slane %v533, %v547
        %v549 = vmul.f32 %v287, %v548
        %v550 = vadd.f32 %v544, %v549
        %v551 = vlaneseq
        %v552 = vshrl.u32 %v551, 7
        %v553 = vsub.s32 3, %v552
        %v554 = vrot.slane %v533, %v553
        %v555 = vmul.f32 %v297, %v554
        %v556 = vadd.f32 %v550, %v555
        %v557 = vadd.f32 %v261, %v556
        %v558 = vmax.f32 %v557, 0.0
        %v559 = vand.u32 2147483647, %v557
        %v560 = vsub.f32 0.0, %v559
        %v561 = vmul.f32 %v560, 1.442695
        %v562 = vpow.pop %v561
        %v563 = vadd.f32 %v562, 1.0
        %v564 = vlog2.pop %v563
        %v565 = vmul.f32 %v564, 0.6931472
        %v566 = vmul.f32 -0.5, %v562
        %v567 = vadd.f32 %v566, 1.0
        %v568 = vmul.f32 %v567, %v562
        %v569 = vand.u32 2147483647, %v562
        %vm570 = vcmp.lt.f32.partialorder %v569, 0.0004427343
        %v571 = vsel %vm570, %v568, %v565
        %v572 = vadd.f32 %v558, %v571
        %v573 = vadd.f32 %v531, %v572
        %574 = vrot.lane.b32.xlu0 %v213, 5
        %v575 = vpop.permute.xlu0 %574
        %v576 = vlaneseq
        %v577 = vshrl.u32 %v576, 7
        %v578 = vsub.s32 0, %v577
        %v579 = vrot.slane %v575, %v578
        %v580 = vmul.f32 %v268, %v579
        %v581 = vlaneseq
        %v582 = vshrl.u32 %v581, 7
        %v583 = vsub.s32 1, %v582
        %v584 = vrot.slane %v575, %v583
        %v585 = vmul.f32 %v277, %v584
        %v586 = vadd.f32 %v580, %v585
        %v587 = vlaneseq
        %v588 = vshrl.u32 %v587, 7
        %v589 = vsub.s32 2, %v588
        %v590 = vrot.slane %v575, %v589
        %v591 = vmul.f32 %v287, %v590
        %v592 = vadd.f32 %v586, %v591
        %v593 = vlaneseq
        %v594 = vshrl.u32 %v593, 7
        %v595 = vsub.s32 3, %v594
        %v596 = vrot.slane %v575, %v595
        %v597 = vmul.f32 %v297, %v596
        %v598 = vadd.f32 %v592, %v597
        %v599 = vadd.f32 %v261, %v598
        %v600 = vmax.f32 %v599, 0.0
        %v601 = vand.u32 2147483647, %v599
        %v602 = vsub.f32 0.0, %v601
        %v603 = vmul.f32 %v602, 1.442695
        %v604 = vpow.pop %v603
        %v605 = vadd.f32 %v604, 1.0
        %v606 = vlog2.pop %v605
        %v607 = vmul.f32 %v606, 0.6931472
        %v608 = vmul.f32 -0.5, %v604
        %v609 = vadd.f32 %v608, 1.0
        %v610 = vmul.f32 %v609, %v604
        %v611 = vand.u32 2147483647, %v604
        %vm612 = vcmp.lt.f32.partialorder %v611, 0.0004427343
        %v613 = vsel %vm612, %v610, %v607
        %v614 = vadd.f32 %v600, %v613
        %v615 = vadd.f32 %v573, %v614
        %616 = vst [vmem:[%s212] sm:$0xf] %v615
        %s617 = sand.u32 %s118, 1
        %s618 = scalar_lea.sflag [#allocation4], %s617
        %s619 = sand.u32 %s118, 1
        %s620 = smul.addr %s619, 4
        %s621 = scalar_lea.vmem [#allocation5], %s620
        // Predicated region
        $region41: #{tpu_custom_call.1} parent=35 // pred_check
          %p622 = pneg %p128
        $region42: #{tpu_custom_call.1} parent=35 // pred_check_branch
          %624 = sbr.rel (%p622) target = $region44
        $region43: #{tpu_custom_call.1} parent=35 // pred_region
          %s626 = ssub.s32 64, 64
          %627 = vsyncadd %s618, %s626
          %s628 = smul.addr %s21, 64
          %s629 = scalar_lea.hbm %s4, %s628
          %s631 = sshll.u32 %s621, 4
          %s632 = int_to_ptr.vmem [resolvable:$true] %s631
          %634 = dma.vmem_to_hbm [thread:$0]  %s632, 64, %s629, %s618
        $region44: #{tpu_custom_call.1} parent=35 // pred_fallthru
          _
      $region36: #{tpu_custom_call.1} parent=5 // pred_fallthru
        _
      %p635 = scmp.le.s32.totalorder 2, %s16
      // Predicated region
      $region45: #{tpu_custom_call.1} parent=5 // pred_check
        %p636 = pneg %p635
      $region46: #{tpu_custom_call.1} parent=5 // pred_check_branch
        %638 = sbr.rel (%p636) target = $region48
      $region47: #{tpu_custom_call.1} parent=5 // pred_region
        %s639 = ssub.s32 %s16, 2
        // Predicated region
        $region49: #{tpu_custom_call.1} parent=47 // pred_check
          %p640 = pneg %p134
        $region50: #{tpu_custom_call.1} parent=47 // pred_check_branch
          %642 = sbr.rel (%p640) target = $region52
        $region51: #{tpu_custom_call.1} parent=47 // pred_region
          %s643 = sand.u32 %s119, 1
          %s644 = scalar_lea.sflag [#allocation4], %s643
          %s645 = sand.u32 %s119, 1
          %s646 = smul.addr %s645, 4
          %s647 = scalar_lea.vmem [#allocation5], %s646
          %648 = dma.done %s644, 64
        $region52: #{tpu_custom_call.1} parent=47 // pred_fallthru
          _
      $region48: #{tpu_custom_call.1} parent=5 // pred_fallthru
        _
    $region6: #{tpu_custom_call.1} parent=1 // loop_footer
      %s20 = sadd.s32 1, %s16
    $region7: #{tpu_custom_call.1} parent=1 // loop_footer_branch
      %15 = sbr.rel target = $region3
    $region8: #{tpu_custom_call.1} parent=1 // loop_exit
      _
    %649 = vsyncpa [#allocation3], 1
    %s650 = scalar_lea.sflag [#allocation3], 1
    %651 = vsyncpa %s650, 1
    %652 = vsyncpa [#allocation4], 1
    %s653 = scalar_lea.sflag [#allocation4], 1
    %654 = vsyncpa %s653, 1

</llo_original>
